<compile_context>
chip_gen: v5e
topology: v5e:2x2
jax: 0.10.0
libtpu: 0.0.40
codegen_flags: <defaults>
</compile_context>

<pallas_src>
import jax
import jax.numpy as jnp
from jax.experimental import pallas as pl
from jax.experimental.pallas import tpu as pltpu

_MIB = 1024 * 1024
_MXU_TILES = (1024, 512, 256, 128)


def _vmem_capacity_bytes():
    try:
        return int(pltpu.get_tpu_info().vmem_capacity_bytes)
    except Exception:
        return 64 * _MIB  # conservative default (v7x per-TensorCore VMEM)


def _num_tensorcores():
    # v7x is the only TPU generation with 2 TensorCores per chip; it is also the
    # only one with 64 MiB of VMEM per TensorCore (v5e/v6e: 128 MiB, single TC).
    return 2 if _vmem_capacity_bytes() <= 64 * _MIB else 1


def _pick_row_tile(rows, d_in, d_hid, d_out, x_bytes, w_bytes, b_bytes, out_bytes,
                   budget, num_cores, io_depth, row_align):
    """Largest MXU-friendly row tile whose VMEM footprint fits `budget`.

    Returns None when the single-buffered resident weights alone overflow the
    budget (caller then falls back to a narrower weight dtype or bails out).
    """
    # Weights + biases: resident, single-buffered (pl.Buffered(1)).
    fixed = (d_in * d_hid + d_hid * d_out) * w_bytes + (d_hid + d_out) * b_bytes
    if fixed > budget:
        return None
    # Per-row VMEM cost of one grid step.
    per_row = (io_depth * d_in * x_bytes        # x tile buffers
               + io_depth * d_out * out_bytes   # out tile buffers
               + 4 * d_hid                      # f32 hidden activation
               + w_bytes * d_hid                # hidden cast to the MXU dtype
               + 4 * d_out)                     # f32 output before the final cast
    avail = budget - fixed
    tm = int(max(row_align, min(avail // per_row, 1024)))
    # Snap down to MXU-friendly sizes (multiples of the 256x256 / 128x128
    # systolic shape); tiny problems fall back to the sublane-packing granule.
    for s in _MXU_TILES:
        if tm >= s:
            tm = s
            break
    else:
        tm = max(row_align, (tm // row_align) * row_align)
    # Don't use a tile larger than the (row-aligned) problem.
    if rows >= row_align:
        tm = min(tm, (rows // row_align) * row_align)
    # Keep >= 2 grid steps per TensorCore (v7x shards the "parallel" row axis
    # across 2 TCs) so x/out DMAs pipeline behind the MXU work -- but don't
    # shrink already-small tiles just to manufacture steps (per-step overhead).
    min_steps = 2 * num_cores
    while pl.cdiv(rows, tm) < min_steps and tm >= 2 * 128:
        tm //= 2
    return int(tm)


def mlp_kernel(x_ref, w1_ref, b1_ref, w2_ref, b2_ref, o_ref):
    # Cast the x tile to the MXU operand dtype (bf16 by default); both matmuls
    # accumulate in f32 via preferred_element_type.
    x = x_ref[...].astype(w1_ref.dtype)                                 # (TM, D_in)
    h = jnp.dot(x, w1_ref[...], preferred_element_type=jnp.float32)     # MXU, f32 acc
    h = jnp.maximum(h + b1_ref[...].astype(jnp.float32), 0.0)           # bias + ReLU
    h = h.astype(w2_ref.dtype)                                          # back to MXU dtype
    y = jnp.dot(h, w2_ref[...], preferred_element_type=jnp.float32)     # MXU, f32 acc
    y = y + b2_ref[...].astype(jnp.float32)
    # Dropout: inference mode (identity).
    o_ref[...] = y.astype(o_ref.dtype)


def mlp_pallas(x, w_fc, b_fc, w_proj, b_proj, *, compute_dtype=None):
    """dropout(relu(x @ w_fc + b_fc) @ w_proj + b_proj); dropout = identity (inference).

    x: (..., embed_dim); w_fc: (embed_dim, num_state); b_fc: (num_state,);
    w_proj: (num_state, embed_dim); b_proj: (embed_dim,).
    compute_dtype: MXU operand dtype (defaults to bf16 when the weights are f32);
    accumulation is always f32.  Returns (..., embed_dim) in x.dtype.
    """
    orig_shape = x.shape
    d_in = orig_shape[-1]
    d_hid = w_fc.shape[-1]
    d_out = w_proj.shape[-1]
    assert w_fc.shape == (d_in, d_hid), (w_fc.shape, d_in, d_hid)
    assert w_proj.shape == (d_hid, d_out), (w_proj.shape, d_hid, d_out)

    rows = 1
    for d in orig_shape[:-1]:
        rows *= d
    x2 = x.reshape(rows, d_in)
    b1 = b_fc.reshape(1, d_hid)
    b2 = b_proj.reshape(1, d_out)

    # MXU operand dtype: bf16 is native on v5e/v6e/v7x MXUs and halves the
    # resident weight VMEM; f32 accumulation is kept inside the kernel.
    if compute_dtype is None:
        compute_dtype = jnp.bfloat16 if w_fc.dtype == jnp.float32 else w_fc.dtype
    compute_dtype = jnp.dtype(compute_dtype)

    x_bytes = jnp.dtype(x.dtype).itemsize
    out_bytes = x_bytes
    b_bytes = max(jnp.dtype(b_fc.dtype).itemsize, jnp.dtype(b_proj.dtype).itemsize)

    # VMEM budget: 128 MiB parts (v5e/v6e) can run at ~85% of capacity; the
    # 64 MiB v7x parts keep extra headroom for Mosaic-internal scratch.
    vmem_cap = _vmem_capacity_bytes()
    frac = 0.75 if vmem_cap <= 64 * _MIB else 0.85
    vmem_limit = min(int(vmem_cap * frac), 112 * _MIB)
    budget = int(vmem_limit * 0.85)
    num_cores = _num_tensorcores()

    # Deepen x/out buffering only when the kernel is HBM-bound (small feature
    # dims, huge row count).
    flops_per_row = 2 * d_hid * (d_in + d_out)
    hbm_bytes_per_row = d_in * x_bytes + d_out * out_bytes
    io_depth = 3 if flops_per_row < 256 * hbm_bytes_per_row else 2

    def tile_for(dtype):
        wb = jnp.dtype(dtype).itemsize
        align = 16 if wb == 2 else 8   # bf16 packs 16 rows per vreg
        return _pick_row_tile(rows, d_in, d_hid, d_out, x_bytes, wb, b_bytes,
                              out_bytes, budget, num_cores, io_depth, align)

    tm = tile_for(compute_dtype)
    if tm is None and compute_dtype.itemsize > 2:
        # f32 weights overflow the VMEM budget: fall back to bf16 MXU operands.
        compute_dtype = jnp.dtype(jnp.bfloat16)
        tm = tile_for(compute_dtype)
    if tm is None:
        # TODO(synk): tile d_hid / d_out over a second ("arbitrary") grid axis with
        # an f32 VMEM accumulator (pl.when init/finalize) for weights that do not
        # fit VMEM even in bf16.
        raise NotImplementedError("MLP weights exceed the VMEM budget; "
                                  "hidden/output-dim tiling is not implemented.")

    w1 = w_fc.astype(compute_dtype)
    w2 = w_proj.astype(compute_dtype)

    grid = (pl.cdiv(rows, tm),)   # trailing partial row block is masked by Pallas

    cost = pl.CostEstimate(
        flops=int(2 * rows * d_hid * (d_in + d_out)),
        transcendentals=0,
        bytes_accessed=int(rows * d_in * x_bytes + rows * d_out * out_bytes
                           + (d_in * d_hid + d_hid * d_out) * compute_dtype.itemsize
                           + (d_hid + d_out) * b_bytes),
    )

    def build(resident_mode, io_mode):
        def io_spec(shape, index_map):
            if io_mode is None:
                return pl.BlockSpec(shape, index_map)
            return pl.BlockSpec(shape, index_map, pipeline_mode=io_mode)

        def res_spec(shape):
            if resident_mode is None:
                return pl.BlockSpec(shape, lambda i: (0, 0))
            return pl.BlockSpec(shape, lambda i: (0, 0), pipeline_mode=resident_mode)

        return pl.pallas_call(
            mlp_kernel,
            out_shape=jax.ShapeDtypeStruct((rows, d_out), x.dtype),
            grid_spec=pltpu.PrefetchScalarGridSpec(
                num_scalar_prefetch=0,
                grid=grid,
                in_specs=[
                    io_spec((tm, d_in), lambda i: (i, 0)),   # x row tile
                    res_spec((d_in, d_hid)),                 # W_fc   (resident)
                    res_spec((1, d_hid)),                    # b_fc   (resident)
                    res_spec((d_hid, d_out)),                # W_proj (resident)
                    res_spec((1, d_out)),                    # b_proj (resident)
                ],
                # d_out a multiple of 128 keeps output stores lane-dense
                # (unmasked vst); other widths still work via the full-dim rule.
                out_specs=io_spec((tm, d_out), lambda i: (i, 0)),
            ),
            compiler_params=pltpu.CompilerParams(
                dimension_semantics=("parallel",),
                vmem_limit_bytes=int(vmem_limit),
            ),
            cost_estimate=cost,
        )

    try:
        # Preferred configuration: single-buffered resident weights/biases and
        # (when HBM-bound) 3-deep buffered x/out tiles.
        io_mode = pl.Buffered(io_depth) if io_depth != 2 else None
        out = build(pl.Buffered(1), io_mode)(x2, w1, b1, w2, b2)
    except Exception:
        # Conservative fallback: default (double-buffered) pipelining everywhere.
        out = build(None, None)(x2, w1, b1, w2, b2)

    return out.reshape(orig_shape[:-1] + (d_out,))


if __name__ == "__main__":
    # Small GPT-1-style shapes: (batch, seq, embed_dim) tokens, num_state = 4*embed_dim.
    batch, seq = 2, 8
    embed_dim, num_state = 128, 512
    keep_prob = 0.1  # module's dropout prob; inference mode -> identity

    key = jax.random.PRNGKey(0)
    k_x, k_w1, k_b1, k_w2, k_b2 = jax.random.split(key, 5)
    x = jax.random.normal(k_x, (batch, seq, embed_dim), dtype=jnp.float32)
    # Conv1D(rf=1) init: w ~ N(0, 0.02); nonzero biases to exercise the bias path.
    w_fc = 0.02 * jax.random.normal(k_w1, (embed_dim, num_state), dtype=jnp.float32)
    b_fc = 0.01 * jax.random.normal(k_b1, (num_state,), dtype=jnp.float32)
    w_proj = 0.02 * jax.random.normal(k_w2, (num_state, embed_dim), dtype=jnp.float32)
    b_proj = 0.01 * jax.random.normal(k_b2, (embed_dim,), dtype=jnp.float32)

    out = mlp_pallas(x, w_fc, b_fc, w_proj, b_proj)
    jax.block_until_ready(out)

    # Pure-JAX f32 reference (dropout = identity in inference).
    x2d = x.reshape(-1, embed_dim)
    h_ref = jnp.maximum(x2d @ w_fc + b_fc, 0.0)
    ref = (h_ref @ w_proj + b_proj).reshape(batch, seq, embed_dim)

    assert out.shape == x.shape, (out.shape, x.shape)
    # bf16 MXU operands with f32 accumulation vs the pure-f32 reference.
    assert jnp.allclose(out, ref, atol=1e-2, rtol=5e-2), "mismatch vs reference"

    print("KERNEL_OK")
</pallas_src>

<mosaic_0001>
module attributes {stable_mosaic.version = 11 : i64} {
  func.func @mlp_kernel(%arg0: i32, %arg1: memref<16x128xf32, #tpu.memory_space<vmem>>, %arg2: memref<128x512xbf16, #tpu.memory_space<vmem>>, %arg3: memref<1x512xf32, #tpu.memory_space<vmem>>, %arg4: memref<512x128xbf16, #tpu.memory_space<vmem>>, %arg5: memref<1x128xf32, #tpu.memory_space<vmem>>, %arg6: memref<16x128xf32, #tpu.memory_space<vmem>>) attributes {dimension_semantics = [#tpu.dimension_semantics<parallel>], iteration_bounds = array<i64: 1>, scalar_prefetch = 0 : i64, scratch_operands = 0 : i64, tpu.core_type = #tpu.core_type<tc>, window_params = [{transform_indices = @transform_0, window_bounds = array<i64: 16, 128>}, {pipeline_mode = #tpu.pipeline_mode<synchronous>, transform_indices = @transform_1, window_bounds = array<i64: 128, 512>}, {pipeline_mode = #tpu.pipeline_mode<synchronous>, transform_indices = @transform_2, window_bounds = array<i64: 1, 512>}, {pipeline_mode = #tpu.pipeline_mode<synchronous>, transform_indices = @transform_3, window_bounds = array<i64: 512, 128>}, {pipeline_mode = #tpu.pipeline_mode<synchronous>, transform_indices = @transform_4, window_bounds = array<i64: 1, 128>}, {transform_indices = @transform_5, window_bounds = array<i64: 16, 128>}]} {
    %c0 = arith.constant 0 : index
    %c0_0 = arith.constant 0 : index
    %0 = vector.load %arg1[%c0, %c0_0] : memref<16x128xf32, #tpu.memory_space<vmem>>, vector<16x128xf32>
    %1 = arith.truncf %0 : vector<16x128xf32> to vector<16x128xbf16>
    %c0_1 = arith.constant 0 : index
    %c0_2 = arith.constant 0 : index
    %2 = vector.load %arg2[%c0_1, %c0_2] : memref<128x512xbf16, #tpu.memory_space<vmem>>, vector<128x512xbf16>
    %cst = arith.constant dense<0.000000e+00> : vector<16x512xf32>
    %3 = tpu.matmul %1, %2, %cst {dimension_numbers = #tpu.dot_dimension_numbers<[1], [0], [0], [1], [0, 0, 1, 1], [], []>} : vector<16x128xbf16>, vector<128x512xbf16>, vector<16x512xf32> -> vector<16x512xf32>
    %c0_3 = arith.constant 0 : index
    %c0_4 = arith.constant 0 : index
    %4 = vector.load %arg3[%c0_3, %c0_4] : memref<1x512xf32, #tpu.memory_space<vmem>>, vector<1x512xf32>
    %5 = vector.broadcast %4 : vector<1x512xf32> to vector<16x512xf32>
    %6 = arith.addf %3, %5 : vector<16x512xf32>
    %cst_5 = arith.constant 0.000000e+00 : f32
    %7 = vector.broadcast %cst_5 : f32 to vector<16x512xf32>
    %8 = arith.maximumf %6, %7 : vector<16x512xf32>
    %9 = arith.truncf %8 : vector<16x512xf32> to vector<16x512xbf16>
    %c0_6 = arith.constant 0 : index
    %c0_7 = arith.constant 0 : index
    %10 = vector.load %arg4[%c0_6, %c0_7] : memref<512x128xbf16, #tpu.memory_space<vmem>>, vector<512x128xbf16>
    %cst_8 = arith.constant dense<0.000000e+00> : vector<16x128xf32>
    %11 = tpu.matmul %9, %10, %cst_8 {dimension_numbers = #tpu.dot_dimension_numbers<[1], [0], [0], [1], [0, 0, 1, 1], [], []>} : vector<16x512xbf16>, vector<512x128xbf16>, vector<16x128xf32> -> vector<16x128xf32>
    %c0_9 = arith.constant 0 : index
    %c0_10 = arith.constant 0 : index
    %12 = vector.load %arg5[%c0_9, %c0_10] : memref<1x128xf32, #tpu.memory_space<vmem>>, vector<1x128xf32>
    %13 = vector.broadcast %12 : vector<1x128xf32> to vector<16x128xf32>
    %14 = arith.addf %11, %13 : vector<16x128xf32>
    %c0_11 = arith.constant 0 : index
    %c0_12 = arith.constant 0 : index
    %15 = vector.load %arg6[%c0_11, %c0_12] : memref<16x128xf32, #tpu.memory_space<vmem>>, vector<16x128xf32>
    tpu.vector_store %arg6[%c0_11, %c0_12], %14 {strides = array<i32>} : memref<16x128xf32, #tpu.memory_space<vmem>>, vector<16x128xf32>,
    return
  }
  func.func @transform_0(%arg0: i32) -> (i32, i32) {
    %c0_i32 = arith.constant 0 : i32
    %c0_i32_0 = arith.constant 0 : i32
    return %arg0, %c0_i32 : i32, i32
  }
  func.func @transform_1(%arg0: i32) -> (i32, i32) {
    %c0_i32 = arith.constant 0 : i32
    %c0_i32_0 = arith.constant 0 : i32
    %c0_i32_1 = arith.constant 0 : i32
    return %c0_i32, %c0_i32_0 : i32, i32
  }
  func.func @transform_2(%arg0: i32) -> (i32, i32) {
    %c0_i32 = arith.constant 0 : i32
    %c0_i32_0 = arith.constant 0 : i32
    %c0_i32_1 = arith.constant 0 : i32
    return %c0_i32, %c0_i32_0 : i32, i32
  }
  func.func @transform_3(%arg0: i32) -> (i32, i32) {
    %c0_i32 = arith.constant 0 : i32
    %c0_i32_0 = arith.constant 0 : i32
    %c0_i32_1 = arith.constant 0 : i32
    return %c0_i32, %c0_i32_0 : i32, i32
  }
  func.func @transform_4(%arg0: i32) -> (i32, i32) {
    %c0_i32 = arith.constant 0 : i32
    %c0_i32_0 = arith.constant 0 : i32
    %c0_i32_1 = arith.constant 0 : i32
    return %c0_i32, %c0_i32_0 : i32, i32
  }
  func.func @transform_5(%arg0: i32) -> (i32, i32) {
    %c0_i32 = arith.constant 0 : i32
    %c0_i32_0 = arith.constant 0 : i32
    return %arg0, %c0_i32 : i32, i32
  }
}

module attributes {stable_mosaic.version = 11 : i64} {
  func.func @mlp_kernel(%arg0: i32, %arg1: memref<16x128xf32, #tpu.memory_space<vmem>>, %arg2: memref<128x512xbf16, #tpu.memory_space<vmem>>, %arg3: memref<1x512xf32, #tpu.memory_space<vmem>>, %arg4: memref<512x128xbf16, #tpu.memory_space<vmem>>, %arg5: memref<1x128xf32, #tpu.memory_space<vmem>>, %arg6: memref<16x128xf32, #tpu.memory_space<vmem>>) attributes {dimension_semantics = [#tpu.dimension_semantics<parallel>], iteration_bounds = array<i64: 1>, scalar_prefetch = 0 : i64, scratch_operands = 0 : i64, tpu.core_type = #tpu.core_type<tc>, window_params = [{transform_indices = @transform_0, window_bounds = array<i64: 16, 128>}, {pipeline_mode = #tpu.pipeline_mode<synchronous>, transform_indices = @transform_1, window_bounds = array<i64: 128, 512>}, {pipeline_mode = #tpu.pipeline_mode<synchronous>, transform_indices = @transform_2, window_bounds = array<i64: 1, 512>}, {pipeline_mode = #tpu.pipeline_mode<synchronous>, transform_indices = @transform_3, window_bounds = array<i64: 512, 128>}, {pipeline_mode = #tpu.pipeline_mode<synchronous>, transform_indices = @transform_4, window_bounds = array<i64: 1, 128>}, {transform_indices = @transform_5, window_bounds = array<i64: 16, 128>}]} {
    %c0 = arith.constant 0 : index
    %c0_0 = arith.constant 0 : index
    %0 = vector.load %arg1[%c0, %c0_0] : memref<16x128xf32, #tpu.memory_space<vmem>>, vector<16x128xf32>
    %1 = arith.truncf %0 : vector<16x128xf32> to vector<16x128xbf16>
    %c0_1 = arith.constant 0 : index
    %c0_2 = arith.constant 0 : index
    %2 = vector.load %arg2[%c0_1, %c0_2] : memref<128x512xbf16, #tpu.memory_space<vmem>>, vector<128x512xbf16>
    %cst = arith.constant dense<0.000000e+00> : vector<16x512xf32>
    %3 = tpu.matmul %1, %2, %cst {dimension_numbers = #tpu.dot_dimension_numbers<[1], [0], [0], [1], [0, 0, 1, 1], [], []>} : vector<16x128xbf16>, vector<128x512xbf16>, vector<16x512xf32> -> vector<16x512xf32>
    %c0_3 = arith.constant 0 : index
    %c0_4 = arith.constant 0 : index
    %4 = vector.load %arg3[%c0_3, %c0_4] : memref<1x512xf32, #tpu.memory_space<vmem>>, vector<1x512xf32>
    %5 = vector.broadcast %4 : vector<1x512xf32> to vector<16x512xf32>
    %6 = arith.addf %3, %5 : vector<16x512xf32>
    %cst_5 = arith.constant 0.000000e+00 : f32
    %7 = vector.broadcast %cst_5 : f32 to vector<16x512xf32>
    %8 = arith.maximumf %6, %7 : vector<16x512xf32>
    %9 = arith.truncf %8 : vector<16x512xf32> to vector<16x512xbf16>
    %c0_6 = arith.constant 0 : index
    %c0_7 = arith.constant 0 : index
    %10 = vector.load %arg4[%c0_6, %c0_7] : memref<512x128xbf16, #tpu.memory_space<vmem>>, vector<512x128xbf16>
    %cst_8 = arith.constant dense<0.000000e+00> : vector<16x128xf32>
    %11 = tpu.matmul %9, %10, %cst_8 {dimension_numbers = #tpu.dot_dimension_numbers<[1], [0], [0], [1], [0, 0, 1, 1], [], []>} : vector<16x512xbf16>, vector<512x128xbf16>, vector<16x128xf32> -> vector<16x128xf32>
    %c0_9 = arith.constant 0 : index
    %c0_10 = arith.constant 0 : index
    %12 = vector.load %arg5[%c0_9, %c0_10] : memref<1x128xf32, #tpu.memory_space<vmem>>, vector<1x128xf32>
    %13 = vector.broadcast %12 : vector<1x128xf32> to vector<16x128xf32>
    %14 = arith.addf %11, %13 : vector<16x128xf32>
    %c0_11 = arith.constant 0 : index
    %c0_12 = arith.constant 0 : index
    %15 = vector.load %arg6[%c0_11, %c0_12] : memref<16x128xf32, #tpu.memory_space<vmem>>, vector<16x128xf32>
    tpu.vector_store %arg6[%c0_11, %c0_12], %14 {strides = array<i32>} : memref<16x128xf32, #tpu.memory_space<vmem>>, vector<16x128xf32>,
    return
  }
  func.func @transform_0(%arg0: i32) -> (i32, i32) {
    %c0_i32 = arith.constant 0 : i32
    %c0_i32_0 = arith.constant 0 : i32
    return %arg0, %c0_i32 : i32, i32
  }
  func.func @transform_1(%arg0: i32) -> (i32, i32) {
    %c0_i32 = arith.constant 0 : i32
    %c0_i32_0 = arith.constant 0 : i32
    %c0_i32_1 = arith.constant 0 : i32
    return %c0_i32, %c0_i32_0 : i32, i32
  }
  func.func @transform_2(%arg0: i32) -> (i32, i32) {
    %c0_i32 = arith.constant 0 : i32
    %c0_i32_0 = arith.constant 0 : i32
    %c0_i32_1 = arith.constant 0 : i32
    return %c0_i32, %c0_i32_0 : i32, i32
  }
  func.func @transform_3(%arg0: i32) -> (i32, i32) {
    %c0_i32 = arith.constant 0 : i32
    %c0_i32_0 = arith.constant 0 : i32
    %c0_i32_1 = arith.constant 0 : i32
    return %c0_i32, %c0_i32_0 : i32, i32
  }
  func.func @transform_4(%arg0: i32) -> (i32, i32) {
    %c0_i32 = arith.constant 0 : i32
    %c0_i32_0 = arith.constant 0 : i32
    %c0_i32_1 = arith.constant 0 : i32
    return %c0_i32, %c0_i32_0 : i32, i32
  }
  func.func @transform_5(%arg0: i32) -> (i32, i32) {
    %c0_i32 = arith.constant 0 : i32
    %c0_i32_0 = arith.constant 0 : i32
    return %arg0, %c0_i32 : i32, i32
  }
}

</mosaic_0001>

<llo_original>
// kernel: tpu_custom_call.1
$region0: #{tpu_custom_call.1}
  #allocation0 [shape = 'u32[]', space=smem, size = 0x4, offset = 0x4, fixed_abs, tag = 'smem constant byte address 0x4 - core index']
  #allocation1 [shape = 'u32[72,128]{1,0:T(1,128)}', space=vmem, size = 0x9000, scoped, tag = 'internal scratch']
  %s0 = inlined_call_operand.hbm [shape: f32[16,128], index: 0, kind: input, shape index: {}]
  %s1 = inlined_call_operand.hbm [shape: bf16[128,512], index: 1, kind: input, shape index: {}]
  %s2 = inlined_call_operand.hbm [shape: f32[1,512], index: 2, kind: input, shape index: {}]
  %s3 = inlined_call_operand.hbm [shape: bf16[512,128], index: 3, kind: input, shape index: {}]
  %s4 = inlined_call_operand.vmem [shape: f32[1,128], index: 4, kind: input, shape index: {}]
  %s5 = inlined_call_operand.hbm [shape: f32[16,128], index: 5, kind: output, shape index: {}]
  %s6 = sld [smem:[#allocation0]]
  $region46: #{tpu_custom_call.1} parent=0
    _
  %s8 = ssub.s32 1, %s6
  %s9 = scalar_select 0, %s8, %s6
  $region1: #{tpu_custom_call.1} parent=0
    #allocation2 [shape = 'u8[8192]{0}', space=vmem, size = 0x2000, scoped, tag = 'input window, operand 0, single buffered']
    #allocation3 [shape = 's32[1]{0}', space=sflag, size = 0x4, scoped, tag = 'scoped memory for tpu_custom_call.1']
    #allocation4 [shape = 's32[1]{0}', space=sflag, size = 0x4, scoped, tag = 'scoped memory for tpu_custom_call.1']
    #allocation5 [shape = 'u8[131072]{0}', space=vmem, size = 0x20000, scoped, tag = 'input window, operand 1, single buffered']
    #allocation6 [shape = 's32[1]{0}', space=sflag, size = 0x4, scoped, tag = 'scoped memory for tpu_custom_call.1']
    #allocation7 [shape = 'u8[2048]{0}', space=vmem, size = 0x800, scoped, tag = 'input window, operand 2, single buffered']
    #allocation8 [shape = 'u8[131072]{0}', space=vmem, size = 0x20000, scoped, tag = 'input window, operand 3, single buffered']
    #allocation9 [shape = 's32[1]{0}', space=sflag, size = 0x4, scoped, tag = 'scoped memory for tpu_custom_call.1']
    #allocation10 [shape = 'u8[8192]{0}', space=vmem, size = 0x2000, scoped, tag = 'output window, operand 0, single buffered']
    %10 = vsyncpa [#allocation3], 0
    %11 = vsyncpa [#allocation6], 0
    %12 = vsyncpa [#allocation9], 0
    %13 = vsyncpa [#allocation4], 0
    // Predicated region
    $region2: #{tpu_custom_call.1} parent=1 // pred_check
      _
    $region3: #{tpu_custom_call.1} parent=1 // pred_check_branch
      %15 = sbr.rel (0) target = $region5
    $region4: #{tpu_custom_call.1} parent=1 // pred_region
      %17 = vsyncadd [#allocation3], 0
      %s18 = sshll.u32 %s0, 4
      %s19 = int_to_ptr.hbm [resolvable:$true] %s18
      %s20 = sshll.u32 [#allocation2], 4
      %s21 = int_to_ptr.vmem [resolvable:$true] %s20
      %26 = dma.hbm_to_vmem [thread:$0]  %s19, 256, %s21, [#allocation3], 128, 128, 8
    $region5: #{tpu_custom_call.1} parent=1 // pred_fallthru
      _
    // Predicated region
    $region6: #{tpu_custom_call.1} parent=1 // pred_check
      _
    $region7: #{tpu_custom_call.1} parent=1 // pred_check_branch
      %28 = sbr.rel (0) target = $region9
    $region8: #{tpu_custom_call.1} parent=1 // pred_region
      %30 = vsyncadd [#allocation6], 0
      %s31 = sshll.u32 %s1, 4
      %s32 = int_to_ptr.hbm [resolvable:$true] %s31
      %s33 = sshll.u32 [#allocation5], 4
      %s34 = int_to_ptr.vmem [resolvable:$true] %s33
      %39 = dma.hbm_to_vmem [thread:$0]  %s32, 4096, %s34, [#allocation6], 256, 256, 16
    $region9: #{tpu_custom_call.1} parent=1 // pred_fallthru
      _
    // Predicated region
    $region10: #{tpu_custom_call.1} parent=1 // pred_check
      _
    $region11: #{tpu_custom_call.1} parent=1 // pred_check_branch
      %41 = sbr.rel (0) target = $region13
    $region12: #{tpu_custom_call.1} parent=1 // pred_region
      %43 = vsyncadd [#allocation6], 0
      %s45 = sshll.u32 %s2, 4
      %s46 = int_to_ptr.hbm [resolvable:$true] %s45
      %s47 = sshll.u32 [#allocation7], 4
      %s48 = int_to_ptr.vmem [resolvable:$true] %s47
      %50 = dma.hbm_to_vmem [thread:$0]  %s46, 64, %s48, [#allocation6]
    $region13: #{tpu_custom_call.1} parent=1 // pred_fallthru
      _
    // Predicated region
    $region14: #{tpu_custom_call.1} parent=1 // pred_check
      _
    $region15: #{tpu_custom_call.1} parent=1 // pred_check_branch
      %52 = sbr.rel (0) target = $region17
    $region16: #{tpu_custom_call.1} parent=1 // pred_region
      %54 = vsyncadd [#allocation9], 0
      %s55 = sshll.u32 %s3, 4
      %s56 = int_to_ptr.hbm [resolvable:$true] %s55
      %s57 = sshll.u32 [#allocation8], 4
      %s58 = int_to_ptr.vmem [resolvable:$true] %s57
      %63 = dma.hbm_to_vmem [thread:$0]  %s56, 4096, %s58, [#allocation9], 64, 64, 4
    $region17: #{tpu_custom_call.1} parent=1 // pred_fallthru
      _
    // Predicated region
    $region18: #{tpu_custom_call.1} parent=1 // pred_check
      _
    $region19: #{tpu_custom_call.1} parent=1 // pred_check_branch
      %65 = sbr.rel (0) target = $region21
    $region20: #{tpu_custom_call.1} parent=1 // pred_region
      _
    $region21: #{tpu_custom_call.1} parent=1 // pred_fallthru
      _
    // Predicated region
    $region22: #{tpu_custom_call.1} parent=1 // pred_check
      _
    $region23: #{tpu_custom_call.1} parent=1 // pred_check_branch
      %67 = sbr.rel (0) target = $region25
    $region24: #{tpu_custom_call.1} parent=1 // pred_region
      %69 = dma.done [#allocation3], 256
    $region25: #{tpu_custom_call.1} parent=1 // pred_fallthru
      _
    // Predicated region
    $region26: #{tpu_custom_call.1} parent=1 // pred_check
      _
    $region27: #{tpu_custom_call.1} parent=1 // pred_check_branch
      %71 = sbr.rel (0) target = $region29
    $region28: #{tpu_custom_call.1} parent=1 // pred_region
      %73 = dma.done [#allocation6], 4096
    $region29: #{tpu_custom_call.1} parent=1 // pred_fallthru
      _
    // Predicated region
    $region30: #{tpu_custom_call.1} parent=1 // pred_check
      _
    $region31: #{tpu_custom_call.1} parent=1 // pred_check_branch
      %75 = sbr.rel (0) target = $region33
    $region32: #{tpu_custom_call.1} parent=1 // pred_region
      %77 = dma.done [#allocation6], 64
    $region33: #{tpu_custom_call.1} parent=1 // pred_fallthru
      _
    // Predicated region
    $region34: #{tpu_custom_call.1} parent=1 // pred_check
      _
    $region35: #{tpu_custom_call.1} parent=1 // pred_check_branch
      %79 = sbr.rel (0) target = $region37
    $region36: #{tpu_custom_call.1} parent=1 // pred_region
      %81 = dma.done [#allocation9], 4096
    $region37: #{tpu_custom_call.1} parent=1 // pred_fallthru
      _
    %v82 = vld [vmem:[#allocation2] sm:$0xff]
    %v83 = vld [vmem:[#allocation2 + $0x8] sm:$0xff]
    %v84 = vpack.c.bf16 %v83, %v82
    %v85 = vld [vmem:[#allocation5] sm:$0xff]
    %v86 = vld [vmem:[#allocation5 + $0x8] sm:$0xff]
    %v87 = vld [vmem:[#allocation5 + $0x10] sm:$0xff]
    %v88 = vld [vmem:[#allocation5 + $0x18] sm:$0xff]
    %v89 = vld [vmem:[#allocation5 + $0x20] sm:$0xff]
    %v90 = vld [vmem:[#allocation5 + $0x28] sm:$0xff]
    %v91 = vld [vmem:[#allocation5 + $0x30] sm:$0xff]
    %v92 = vld [vmem:[#allocation5 + $0x38] sm:$0xff]
    %v93 = vld [vmem:[#allocation5 + $0x40] sm:$0xff]
    %v94 = vld [vmem:[#allocation5 + $0x48] sm:$0xff]
    %v95 = vld [vmem:[#allocation5 + $0x50] sm:$0xff]
    %v96 = vld [vmem:[#allocation5 + $0x58] sm:$0xff]
    %v97 = vld [vmem:[#allocation5 + $0x60] sm:$0xff]
    %v98 = vld [vmem:[#allocation5 + $0x68] sm:$0xff]
    %v99 = vld [vmem:[#allocation5 + $0x70] sm:$0xff]
    %v100 = vld [vmem:[#allocation5 + $0x78] sm:$0xff]
    %v101 = vld [vmem:[#allocation5 + $0x80] sm:$0xff]
    %v102 = vld [vmem:[#allocation5 + $0x88] sm:$0xff]
    %v103 = vld [vmem:[#allocation5 + $0x90] sm:$0xff]
    %v104 = vld [vmem:[#allocation5 + $0x98] sm:$0xff]
    %v105 = vld [vmem:[#allocation5 + $0xa0] sm:$0xff]
    %v106 = vld [vmem:[#allocation5 + $0xa8] sm:$0xff]
    %v107 = vld [vmem:[#allocation5 + $0xb0] sm:$0xff]
    %v108 = vld [vmem:[#allocation5 + $0xb8] sm:$0xff]
    %v109 = vld [vmem:[#allocation5 + $0xc0] sm:$0xff]
    %v110 = vld [vmem:[#allocation5 + $0xc8] sm:$0xff]
    %v111 = vld [vmem:[#allocation5 + $0xd0] sm:$0xff]
    %v112 = vld [vmem:[#allocation5 + $0xd8] sm:$0xff]
    %v113 = vld [vmem:[#allocation5 + $0xe0] sm:$0xff]
    %v114 = vld [vmem:[#allocation5 + $0xe8] sm:$0xff]
    %v115 = vld [vmem:[#allocation5 + $0xf0] sm:$0xff]
    %v116 = vld [vmem:[#allocation5 + $0xf8] sm:$0xff]
    %v117 = vld [vmem:[#allocation7] sm:$0xf]
    %v119 = vperm.slane %v117, 0
    %v120 = vperm.slane %v117, 1
    %v121 = vperm.slane %v117, 2
    %v122 = vperm.slane %v117, 3
    %v159 = vunpack.c.l.b16 %v85
    %v160 = vunpack.c.h.b16 %v85
    %v161 = vunpack.c.l.b16 %v86
    %v162 = vunpack.c.h.b16 %v86
    %v163 = vunpack.c.l.b16 %v87
    %v164 = vunpack.c.h.b16 %v87
    %v165 = vunpack.c.l.b16 %v88
    %v166 = vunpack.c.h.b16 %v88
    %v167 = vunpack.c.l.b16 %v89
    %v168 = vunpack.c.h.b16 %v89
    %v169 = vunpack.c.l.b16 %v90
    %v170 = vunpack.c.h.b16 %v90
    %v171 = vunpack.c.l.b16 %v91
    %v172 = vunpack.c.h.b16 %v91
    %v173 = vunpack.c.l.b16 %v92
    %v174 = vunpack.c.h.b16 %v92
    %v175 = vunpack.c.l.b16 %v93
    %v176 = vunpack.c.h.b16 %v93
    %v177 = vunpack.c.l.b16 %v94
    %v178 = vunpack.c.h.b16 %v94
    %v179 = vunpack.c.l.b16 %v95
    %v180 = vunpack.c.h.b16 %v95
    %v181 = vunpack.c.l.b16 %v96
    %v182 = vunpack.c.h.b16 %v96
    %v183 = vunpack.c.l.b16 %v97
    %v184 = vunpack.c.h.b16 %v97
    %v185 = vunpack.c.l.b16 %v98
    %v186 = vunpack.c.h.b16 %v98
    %v187 = vunpack.c.l.b16 %v99
    %v188 = vunpack.c.h.b16 %v99
    %v189 = vunpack.c.l.b16 %v100
    %v190 = vunpack.c.h.b16 %v100
    %v191 = vunpack.c.l.b16 %v101
    %v192 = vunpack.c.h.b16 %v101
    %v193 = vunpack.c.l.b16 %v102
    %v194 = vunpack.c.h.b16 %v102
    %v195 = vunpack.c.l.b16 %v103
    %v196 = vunpack.c.h.b16 %v103
    %v197 = vunpack.c.l.b16 %v104
    %v198 = vunpack.c.h.b16 %v104
    %v199 = vunpack.c.l.b16 %v105
    %v200 = vunpack.c.h.b16 %v105
    %v201 = vunpack.c.l.b16 %v106
    %v202 = vunpack.c.h.b16 %v106
    %v203 = vunpack.c.l.b16 %v107
    %v204 = vunpack.c.h.b16 %v107
    %v205 = vunpack.c.l.b16 %v108
    %v206 = vunpack.c.h.b16 %v108
    %v207 = vunpack.c.l.b16 %v109
    %v208 = vunpack.c.h.b16 %v109
    %v209 = vunpack.c.l.b16 %v110
    %v210 = vunpack.c.h.b16 %v110
    %v211 = vunpack.c.l.b16 %v111
    %v212 = vunpack.c.h.b16 %v111
    %v213 = vunpack.c.l.b16 %v112
    %v214 = vunpack.c.h.b16 %v112
    %v215 = vunpack.c.l.b16 %v113
    %v216 = vunpack.c.h.b16 %v113
    %v217 = vunpack.c.l.b16 %v114
    %v218 = vunpack.c.h.b16 %v114
    %v219 = vunpack.c.l.b16 %v115
    %v220 = vunpack.c.h.b16 %v115
    %v221 = vunpack.c.l.b16 %v116
    %v222 = vunpack.c.h.b16 %v116
    %v223 = vpack.c.b16 %v163, %v159
    %v224 = vpack.c.b16 %v164, %v160
    %v225 = vpack.c.b16 %v165, %v161
    %v226 = vpack.c.b16 %v166, %v162
    %v227 = vpack.c.b16 %v171, %v167
    %v228 = vpack.c.b16 %v172, %v168
    %v229 = vpack.c.b16 %v173, %v169
    %v230 = vpack.c.b16 %v174, %v170
    %v231 = vpack.c.b16 %v179, %v175
    %v232 = vpack.c.b16 %v180, %v176
    %v233 = vpack.c.b16 %v181, %v177
    %v234 = vpack.c.b16 %v182, %v178
    %v235 = vpack.c.b16 %v187, %v183
    %v236 = vpack.c.b16 %v188, %v184
    %v237 = vpack.c.b16 %v189, %v185
    %v238 = vpack.c.b16 %v190, %v186
    %v239 = vpack.c.b16 %v195, %v191
    %v240 = vpack.c.b16 %v196, %v192
    %v241 = vpack.c.b16 %v197, %v193
    %v242 = vpack.c.b16 %v198, %v194
    %v243 = vpack.c.b16 %v203, %v199
    %v244 = vpack.c.b16 %v204, %v200
    %v245 = vpack.c.b16 %v205, %v201
    %v246 = vpack.c.b16 %v206, %v202
    %v247 = vpack.c.b16 %v211, %v207
    %v248 = vpack.c.b16 %v212, %v208
    %v249 = vpack.c.b16 %v213, %v209
    %v250 = vpack.c.b16 %v214, %v210
    %v251 = vpack.c.b16 %v219, %v215
    %v252 = vpack.c.b16 %v220, %v216
    %v253 = vpack.c.b16 %v221, %v217
    %v254 = vpack.c.b16 %v222, %v218
    %287 = vmatpush.bf16.msra.mxu0 %v251
    %288 = vmatpush.bf16.msra.mxu0 %v247
    %289 = vmatpush.bf16.msra.mxu0 %v243
    %290 = vmatpush.bf16.msra.mxu0 %v239
    %291 = vmatpush.bf16.msra.mxu0 %v235
    %292 = vmatpush.bf16.msra.mxu0 %v231
    %293 = vmatpush.bf16.msra.mxu0 %v227
    %294 = vmatpush.bf16.msra.mxu0 %v223
    %295 = vmatmul.bf16.gmra.mxu0 %v84
    %v296 = vpop.f32.mrf.mxu0
    %v297 = vadd.f32 %v119, %v296
    %v298 = vpop.f32.mrf.mxu0
    %v299 = vadd.f32 %v119, %v298
    %300 = vdwg.mxu0
    %301 = vmatpush.bf16.msra.mxu0 %v252
    %302 = vmatpush.bf16.msra.mxu0 %v248
    %303 = vmatpush.bf16.msra.mxu0 %v244
    %304 = vmatpush.bf16.msra.mxu0 %v240
    %305 = vmatpush.bf16.msra.mxu0 %v236
    %306 = vmatpush.bf16.msra.mxu0 %v232
    %307 = vmatpush.bf16.msra.mxu0 %v228
    %308 = vmatpush.bf16.msra.mxu0 %v224
    %309 = vmatmul.bf16.gmra.mxu0 %v84
    %v310 = vpop.f32.mrf.mxu0
    %v311 = vadd.f32 %v120, %v310
    %v312 = vpop.f32.mrf.mxu0
    %v313 = vadd.f32 %v120, %v312
    %314 = vdwg.mxu0
    %315 = vmatpush.bf16.msra.mxu0 %v253
    %316 = vmatpush.bf16.msra.mxu0 %v249
    %317 = vmatpush.bf16.msra.mxu0 %v245
    %318 = vmatpush.bf16.msra.mxu0 %v241
    %319 = vmatpush.bf16.msra.mxu0 %v237
    %320 = vmatpush.bf16.msra.mxu0 %v233
    %321 = vmatpush.bf16.msra.mxu0 %v229
    %322 = vmatpush.bf16.msra.mxu0 %v225
    %323 = vmatmul.bf16.gmra.mxu0 %v84
    %v324 = vpop.f32.mrf.mxu0
    %v325 = vadd.f32 %v121, %v324
    %v326 = vpop.f32.mrf.mxu0
    %v327 = vadd.f32 %v121, %v326
    %328 = vdwg.mxu0
    %329 = vmatpush.bf16.msra.mxu0 %v254
    %330 = vmatpush.bf16.msra.mxu0 %v250
    %331 = vmatpush.bf16.msra.mxu0 %v246
    %332 = vmatpush.bf16.msra.mxu0 %v242
    %333 = vmatpush.bf16.msra.mxu0 %v238
    %334 = vmatpush.bf16.msra.mxu0 %v234
    %335 = vmatpush.bf16.msra.mxu0 %v230
    %336 = vmatpush.bf16.msra.mxu0 %v226
    %337 = vmatmul.bf16.gmra.mxu0 %v84
    %v338 = vpop.f32.mrf.mxu0
    %v339 = vadd.f32 %v122, %v338
    %v340 = vpop.f32.mrf.mxu0
    %v341 = vadd.f32 %v122, %v340
    %342 = vdwg.mxu0
    %v343 = vmax.f32 %v297, 0.0
    %v344 = vmax.f32 %v311, 0.0
    %v345 = vmax.f32 %v325, 0.0
    %v346 = vmax.f32 %v339, 0.0
    %v347 = vmax.f32 %v299, 0.0
    %v348 = vmax.f32 %v313, 0.0
    %v349 = vmax.f32 %v327, 0.0
    %v350 = vmax.f32 %v341, 0.0
    %v351 = vpack.c.bf16 %v347, %v343
    %v352 = vpack.c.bf16 %v348, %v344
    %v353 = vpack.c.bf16 %v349, %v345
    %v354 = vpack.c.bf16 %v350, %v346
    %v355 = vld [vmem:[#allocation8] sm:$0xf]
    %v356 = vld [vmem:[#allocation8 + $0x4] sm:$0xf]
    %v357 = vld [vmem:[#allocation8 + $0x8] sm:$0xf]
    %v358 = vld [vmem:[#allocation8 + $0xc] sm:$0xf]
    %v359 = vld [vmem:[#allocation8 + $0x10] sm:$0xf]
    %v360 = vld [vmem:[#allocation8 + $0x14] sm:$0xf]
    %v361 = vld [vmem:[#allocation8 + $0x18] sm:$0xf]
    %v362 = vld [vmem:[#allocation8 + $0x1c] sm:$0xf]
    %v363 = vld [vmem:[#allocation8 + $0x20] sm:$0xf]
    %v364 = vld [vmem:[#allocation8 + $0x24] sm:$0xf]
    %v365 = vld [vmem:[#allocation8 + $0x28] sm:$0xf]
    %v366 = vld [vmem:[#allocation8 + $0x2c] sm:$0xf]
    %v367 = vld [vmem:[#allocation8 + $0x30] sm:$0xf]
    %v368 = vld [vmem:[#allocation8 + $0x34] sm:$0xf]
    %v369 = vld [vmem:[#allocation8 + $0x38] sm:$0xf]
    %v370 = vld [vmem:[#allocation8 + $0x3c] sm:$0xf]
    %v371 = vld [vmem:[#allocation8 + $0x40] sm:$0xf]
    %v372 = vld [vmem:[#allocation8 + $0x44] sm:$0xf]
    %v373 = vld [vmem:[#allocation8 + $0x48] sm:$0xf]
    %v374 = vld [vmem:[#allocation8 + $0x4c] sm:$0xf]
    %v375 = vld [vmem:[#allocation8 + $0x50] sm:$0xf]
    %v376 = vld [vmem:[#allocation8 + $0x54] sm:$0xf]
    %v377 = vld [vmem:[#allocation8 + $0x58] sm:$0xf]
    %v378 = vld [vmem:[#allocation8 + $0x5c] sm:$0xf]
    %v379 = vld [vmem:[#allocation8 + $0x60] sm:$0xf]
    %v380 = vld [vmem:[#allocation8 + $0x64] sm:$0xf]
    %v381 = vld [vmem:[#allocation8 + $0x68] sm:$0xf]
    %v382 = vld [vmem:[#allocation8 + $0x6c] sm:$0xf]
    %v383 = vld [vmem:[#allocation8 + $0x70] sm:$0xf]
    %v384 = vld [vmem:[#allocation8 + $0x74] sm:$0xf]
    %v385 = vld [vmem:[#allocation8 + $0x78] sm:$0xf]
    %v386 = vld [vmem:[#allocation8 + $0x7c] sm:$0xf]
    %v387 = vld [vmem:[#allocation8 + $0x80] sm:$0xf]
    %v388 = vld [vmem:[#allocation8 + $0x84] sm:$0xf]
    %v389 = vld [vmem:[#allocation8 + $0x88] sm:$0xf]
    %v390 = vld [vmem:[#allocation8 + $0x8c] sm:$0xf]
    %v391 = vld [vmem:[#allocation8 + $0x90] sm:$0xf]
    %v392 = vld [vmem:[#allocation8 + $0x94] sm:$0xf]
    %v393 = vld [vmem:[#allocation8 + $0x98] sm:$0xf]
    %v394 = vld [vmem:[#allocation8 + $0x9c] sm:$0xf]
    %v395 = vld [vmem:[#allocation8 + $0xa0] sm:$0xf]
    %v396 = vld [vmem:[#allocation8 + $0xa4] sm:$0xf]
    %v397 = vld [vmem:[#allocation8 + $0xa8] sm:$0xf]
    %v398 = vld [vmem:[#allocation8 + $0xac] sm:$0xf]
    %v399 = vld [vmem:[#allocation8 + $0xb0] sm:$0xf]
    %v400 = vld [vmem:[#allocation8 + $0xb4] sm:$0xf]
    %v401 = vld [vmem:[#allocation8 + $0xb8] sm:$0xf]
    %v402 = vld [vmem:[#allocation8 + $0xbc] sm:$0xf]
    %v403 = vld [vmem:[#allocation8 + $0xc0] sm:$0xf]
    %v404 = vld [vmem:[#allocation8 + $0xc4] sm:$0xf]
    %v405 = vld [vmem:[#allocation8 + $0xc8] sm:$0xf]
    %v406 = vld [vmem:[#allocation8 + $0xcc] sm:$0xf]
    %v407 = vld [vmem:[#allocation8 + $0xd0] sm:$0xf]
    %v408 = vld [vmem:[#allocation8 + $0xd4] sm:$0xf]
    %v409 = vld [vmem:[#allocation8 + $0xd8] sm:$0xf]
    %v410 = vld [vmem:[#allocation8 + $0xdc] sm:$0xf]
    %v411 = vld [vmem:[#allocation8 + $0xe0] sm:$0xf]
    %v412 = vld [vmem:[#allocation8 + $0xe4] sm:$0xf]
    %v413 = vld [vmem:[#allocation8 + $0xe8] sm:$0xf]
    %v414 = vld [vmem:[#allocation8 + $0xec] sm:$0xf]
    %v415 = vld [vmem:[#allocation8 + $0xf0] sm:$0xf]
    %v416 = vld [vmem:[#allocation8 + $0xf4] sm:$0xf]
    %v417 = vld [vmem:[#allocation8 + $0xf8] sm:$0xf]
    %v418 = vld [vmem:[#allocation8 + $0xfc] sm:$0xf]
    %v419 = vld [vmem:[%s4] sm:$0x1]
    %v421 = vperm.slane %v419, 0
    %v487 = vunpack.c.l.b16 %v355
    %v488 = vunpack.c.l.b16 %v356
    %v489 = vunpack.c.l.b16 %v357
    %v490 = vunpack.c.l.b16 %v358
    %v491 = vunpack.c.l.b16 %v359
    %v492 = vunpack.c.l.b16 %v360
    %v493 = vunpack.c.l.b16 %v361
    %v494 = vunpack.c.l.b16 %v362
    %v495 = vunpack.c.l.b16 %v363
    %v496 = vunpack.c.l.b16 %v364
    %v497 = vunpack.c.l.b16 %v365
    %v498 = vunpack.c.l.b16 %v366
    %v499 = vunpack.c.l.b16 %v367
    %v500 = vunpack.c.l.b16 %v368
    %v501 = vunpack.c.l.b16 %v369
    %v502 = vunpack.c.l.b16 %v370
    %v503 = vunpack.c.l.b16 %v371
    %v504 = vunpack.c.l.b16 %v372
    %v505 = vunpack.c.l.b16 %v373
    %v506 = vunpack.c.l.b16 %v374
    %v507 = vunpack.c.l.b16 %v375
    %v508 = vunpack.c.l.b16 %v376
    %v509 = vunpack.c.l.b16 %v377
    %v510 = vunpack.c.l.b16 %v378
    %v511 = vunpack.c.l.b16 %v379
    %v512 = vunpack.c.l.b16 %v380
    %v513 = vunpack.c.l.b16 %v381
    %v514 = vunpack.c.l.b16 %v382
    %v515 = vunpack.c.l.b16 %v383
    %v516 = vunpack.c.l.b16 %v384
    %v517 = vunpack.c.l.b16 %v385
    %v518 = vunpack.c.l.b16 %v386
    %v519 = vunpack.c.l.b16 %v387
    %v520 = vunpack.c.l.b16 %v388
    %v521 = vunpack.c.l.b16 %v389
    %v522 = vunpack.c.l.b16 %v390
    %v523 = vunpack.c.l.b16 %v391
    %v524 = vunpack.c.l.b16 %v392
    %v525 = vunpack.c.l.b16 %v393
    %v526 = vunpack.c.l.b16 %v394
    %v527 = vunpack.c.l.b16 %v395
    %v528 = vunpack.c.l.b16 %v396
    %v529 = vunpack.c.l.b16 %v397
    %v530 = vunpack.c.l.b16 %v398
    %v531 = vunpack.c.l.b16 %v399
    %v532 = vunpack.c.l.b16 %v400
    %v533 = vunpack.c.l.b16 %v401
    %v534 = vunpack.c.l.b16 %v402
    %v535 = vunpack.c.l.b16 %v403
    %v536 = vunpack.c.l.b16 %v404
    %v537 = vunpack.c.l.b16 %v405
    %v538 = vunpack.c.l.b16 %v406
    %v539 = vunpack.c.l.b16 %v407
    %v540 = vunpack.c.l.b16 %v408
    %v541 = vunpack.c.l.b16 %v409
    %v542 = vunpack.c.l.b16 %v410
    %v543 = vunpack.c.l.b16 %v411
    %v544 = vunpack.c.l.b16 %v412
    %v545 = vunpack.c.l.b16 %v413
    %v546 = vunpack.c.l.b16 %v414
    %v547 = vunpack.c.l.b16 %v415
    %v548 = vunpack.c.l.b16 %v416
    %v549 = vunpack.c.l.b16 %v417
    %v550 = vunpack.c.l.b16 %v418
    %v551 = vpack.c.b16 %v488, %v487
    %v552 = vpack.c.b16 %v490, %v489
    %v553 = vpack.c.b16 %v492, %v491
    %v554 = vpack.c.b16 %v494, %v493
    %v555 = vpack.c.b16 %v496, %v495
    %v556 = vpack.c.b16 %v498, %v497
    %v557 = vpack.c.b16 %v500, %v499
    %v558 = vpack.c.b16 %v502, %v501
    %v559 = vpack.c.b16 %v504, %v503
    %v560 = vpack.c.b16 %v506, %v505
    %v561 = vpack.c.b16 %v508, %v507
    %v562 = vpack.c.b16 %v510, %v509
    %v563 = vpack.c.b16 %v512, %v511
    %v564 = vpack.c.b16 %v514, %v513
    %v565 = vpack.c.b16 %v516, %v515
    %v566 = vpack.c.b16 %v518, %v517
    %v567 = vpack.c.b16 %v520, %v519
    %v568 = vpack.c.b16 %v522, %v521
    %v569 = vpack.c.b16 %v524, %v523
    %v570 = vpack.c.b16 %v526, %v525
    %v571 = vpack.c.b16 %v528, %v527
    %v572 = vpack.c.b16 %v530, %v529
    %v573 = vpack.c.b16 %v532, %v531
    %v574 = vpack.c.b16 %v534, %v533
    %v575 = vpack.c.b16 %v536, %v535
    %v576 = vpack.c.b16 %v538, %v537
    %v577 = vpack.c.b16 %v540, %v539
    %v578 = vpack.c.b16 %v542, %v541
    %v579 = vpack.c.b16 %v544, %v543
    %v580 = vpack.c.b16 %v546, %v545
    %v581 = vpack.c.b16 %v548, %v547
    %v582 = vpack.c.b16 %v550, %v549
    %615 = vmatpush.bf16.msra.mxu0 %v558
    %616 = vmatpush.bf16.msra.mxu0 %v557
    %617 = vmatpush.bf16.msra.mxu0 %v556
    %618 = vmatpush.bf16.msra.mxu0 %v555
    %619 = vmatpush.bf16.msra.mxu0 %v554
    %620 = vmatpush.bf16.msra.mxu0 %v553
    %621 = vmatpush.bf16.msra.mxu0 %v552
    %622 = vmatpush.bf16.msra.mxu0 %v551
    %623 = vmatmul.bf16.gmra.mxu0 %v351
    %v624 = vpop.f32.mrf.mxu0
    %v625 = vadd.f32 %v421, %v624
    %v626 = vpop.f32.mrf.mxu0
    %v627 = vadd.f32 %v421, %v626
    %628 = vdwg.mxu0
    %629 = vmatpush.bf16.msra.mxu0 %v566
    %630 = vmatpush.bf16.msra.mxu0 %v565
    %631 = vmatpush.bf16.msra.mxu0 %v564
    %632 = vmatpush.bf16.msra.mxu0 %v563
    %633 = vmatpush.bf16.msra.mxu0 %v562
    %634 = vmatpush.bf16.msra.mxu0 %v561
    %635 = vmatpush.bf16.msra.mxu0 %v560
    %636 = vmatpush.bf16.msra.mxu0 %v559
    %637 = vmatmul.bf16.gmra.mxu0 %v352
    %v638 = vpop.f32.mrf.mxu0
    %v639 = vadd.f32 %v625, %v638
    %v640 = vpop.f32.mrf.mxu0
    %v641 = vadd.f32 %v627, %v640
    %642 = vdwg.mxu0
    %643 = vmatpush.bf16.msra.mxu0 %v574
    %644 = vmatpush.bf16.msra.mxu0 %v573
    %645 = vmatpush.bf16.msra.mxu0 %v572
    %646 = vmatpush.bf16.msra.mxu0 %v571
    %647 = vmatpush.bf16.msra.mxu0 %v570
    %648 = vmatpush.bf16.msra.mxu0 %v569
    %649 = vmatpush.bf16.msra.mxu0 %v568
    %650 = vmatpush.bf16.msra.mxu0 %v567
    %651 = vmatmul.bf16.gmra.mxu0 %v353
    %v652 = vpop.f32.mrf.mxu0
    %v653 = vadd.f32 %v639, %v652
    %v654 = vpop.f32.mrf.mxu0
    %v655 = vadd.f32 %v641, %v654
    %656 = vdwg.mxu0
    %657 = vmatpush.bf16.msra.mxu0 %v582
    %658 = vmatpush.bf16.msra.mxu0 %v581
    %659 = vmatpush.bf16.msra.mxu0 %v580
    %660 = vmatpush.bf16.msra.mxu0 %v579
    %661 = vmatpush.bf16.msra.mxu0 %v578
    %662 = vmatpush.bf16.msra.mxu0 %v577
    %663 = vmatpush.bf16.msra.mxu0 %v576
    %664 = vmatpush.bf16.msra.mxu0 %v575
    %665 = vmatmul.bf16.gmra.mxu0 %v354
    %v666 = vpop.f32.mrf.mxu0
    %v667 = vadd.f32 %v653, %v666
    %v668 = vpop.f32.mrf.mxu0
    %v669 = vadd.f32 %v655, %v668
    %670 = vdwg.mxu0
    %671 = vst [vmem:[#allocation10] sm:$0xff] %v667
    %672 = vst [vmem:[#allocation10 + $0x8] sm:$0xff] %v669
    // Predicated region
    $region38: #{tpu_custom_call.1} parent=1 // pred_check
      _
    $region39: #{tpu_custom_call.1} parent=1 // pred_check_branch
      %674 = sbr.rel (0) target = $region41
    $region40: #{tpu_custom_call.1} parent=1 // pred_region
      %676 = vsyncadd [#allocation4], 0
      %s677 = sshll.u32 [#allocation10], 4
      %s678 = int_to_ptr.vmem [resolvable:$true] %s677
      %s679 = sshll.u32 %s5, 4
      %s680 = int_to_ptr.hbm [resolvable:$true] %s679
      %685 = dma.vmem_to_hbm [thread:$0]  %s678, 256, %s680, [#allocation4], 128, 128, 8
    $region41: #{tpu_custom_call.1} parent=1 // pred_fallthru
      _
    // Predicated region
    $region42: #{tpu_custom_call.1} parent=1 // pred_check
      _
    $region43: #{tpu_custom_call.1} parent=1 // pred_check_branch
      %687 = sbr.rel (0) target = $region45
    $region44: #{tpu_custom_call.1} parent=1 // pred_region
      %689 = dma.done [#allocation4], 256
    $region45: #{tpu_custom_call.1} parent=1 // pred_fallthru
      _
    %690 = vsyncpa [#allocation3], 1
    %691 = vsyncpa [#allocation6], 1
    %692 = vsyncpa [#allocation9], 1
    %693 = vsyncpa [#allocation4], 1

// kernel: tpu_custom_call.1
$region0: #{tpu_custom_call.1}
  #allocation0 [shape = 'u32[]', space=smem, size = 0x4, offset = 0x4, fixed_abs, tag = 'smem constant byte address 0x4 - core index']
  #allocation1 [shape = 'u32[72,128]{1,0:T(1,128)}', space=vmem, size = 0x9000, scoped, tag = 'internal scratch']
  %s0 = inlined_call_operand.hbm [shape: f32[16,128], index: 0, kind: input, shape index: {}]
  %s1 = inlined_call_operand.hbm [shape: bf16[128,512], index: 1, kind: input, shape index: {}]
  %s2 = inlined_call_operand.hbm [shape: f32[1,512], index: 2, kind: input, shape index: {}]
  %s3 = inlined_call_operand.hbm [shape: bf16[512,128], index: 3, kind: input, shape index: {}]
  %s4 = inlined_call_operand.vmem [shape: f32[1,128], index: 4, kind: input, shape index: {}]
  %s5 = inlined_call_operand.hbm [shape: f32[16,128], index: 5, kind: output, shape index: {}]
  %s6 = sld [smem:[#allocation0]]
  $region46: #{tpu_custom_call.1} parent=0
    _
  %s8 = ssub.s32 1, %s6
  %s9 = scalar_select 0, %s8, %s6
  $region1: #{tpu_custom_call.1} parent=0
    #allocation2 [shape = 'u8[8192]{0}', space=vmem, size = 0x2000, scoped, tag = 'input window, operand 0, single buffered']
    #allocation3 [shape = 's32[1]{0}', space=sflag, size = 0x4, scoped, tag = 'scoped memory for tpu_custom_call.1']
    #allocation4 [shape = 's32[1]{0}', space=sflag, size = 0x4, scoped, tag = 'scoped memory for tpu_custom_call.1']
    #allocation5 [shape = 'u8[131072]{0}', space=vmem, size = 0x20000, scoped, tag = 'input window, operand 1, single buffered']
    #allocation6 [shape = 's32[1]{0}', space=sflag, size = 0x4, scoped, tag = 'scoped memory for tpu_custom_call.1']
    #allocation7 [shape = 'u8[2048]{0}', space=vmem, size = 0x800, scoped, tag = 'input window, operand 2, single buffered']
    #allocation8 [shape = 'u8[131072]{0}', space=vmem, size = 0x20000, scoped, tag = 'input window, operand 3, single buffered']
    #allocation9 [shape = 's32[1]{0}', space=sflag, size = 0x4, scoped, tag = 'scoped memory for tpu_custom_call.1']
    #allocation10 [shape = 'u8[8192]{0}', space=vmem, size = 0x2000, scoped, tag = 'output window, operand 0, single buffered']
    %10 = vsyncpa [#allocation3], 0
    %11 = vsyncpa [#allocation6], 0
    %12 = vsyncpa [#allocation9], 0
    %13 = vsyncpa [#allocation4], 0
    // Predicated region
    $region2: #{tpu_custom_call.1} parent=1 // pred_check
      _
    $region3: #{tpu_custom_call.1} parent=1 // pred_check_branch
      %15 = sbr.rel (0) target = $region5
    $region4: #{tpu_custom_call.1} parent=1 // pred_region
      %17 = vsyncadd [#allocation3], 0
      %s18 = sshll.u32 %s0, 4
      %s19 = int_to_ptr.hbm [resolvable:$true] %s18
      %s20 = sshll.u32 [#allocation2], 4
      %s21 = int_to_ptr.vmem [resolvable:$true] %s20
      %26 = dma.hbm_to_vmem [thread:$0]  %s19, 256, %s21, [#allocation3], 128, 128, 8
    $region5: #{tpu_custom_call.1} parent=1 // pred_fallthru
      _
    // Predicated region
    $region6: #{tpu_custom_call.1} parent=1 // pred_check
      _
    $region7: #{tpu_custom_call.1} parent=1 // pred_check_branch
      %28 = sbr.rel (0) target = $region9
    $region8: #{tpu_custom_call.1} parent=1 // pred_region
      %30 = vsyncadd [#allocation6], 0
      %s31 = sshll.u32 %s1, 4
      %s32 = int_to_ptr.hbm [resolvable:$true] %s31
      %s33 = sshll.u32 [#allocation5], 4
      %s34 = int_to_ptr.vmem [resolvable:$true] %s33
      %39 = dma.hbm_to_vmem [thread:$0]  %s32, 4096, %s34, [#allocation6], 256, 256, 16
    $region9: #{tpu_custom_call.1} parent=1 // pred_fallthru
      _
    // Predicated region
    $region10: #{tpu_custom_call.1} parent=1 // pred_check
      _
    $region11: #{tpu_custom_call.1} parent=1 // pred_check_branch
      %41 = sbr.rel (0) target = $region13
    $region12: #{tpu_custom_call.1} parent=1 // pred_region
      %43 = vsyncadd [#allocation6], 0
      %s45 = sshll.u32 %s2, 4
      %s46 = int_to_ptr.hbm [resolvable:$true] %s45
      %s47 = sshll.u32 [#allocation7], 4
      %s48 = int_to_ptr.vmem [resolvable:$true] %s47
      %50 = dma.hbm_to_vmem [thread:$0]  %s46, 64, %s48, [#allocation6]
    $region13: #{tpu_custom_call.1} parent=1 // pred_fallthru
      _
    // Predicated region
    $region14: #{tpu_custom_call.1} parent=1 // pred_check
      _
    $region15: #{tpu_custom_call.1} parent=1 // pred_check_branch
      %52 = sbr.rel (0) target = $region17
    $region16: #{tpu_custom_call.1} parent=1 // pred_region
      %54 = vsyncadd [#allocation9], 0
      %s55 = sshll.u32 %s3, 4
      %s56 = int_to_ptr.hbm [resolvable:$true] %s55
      %s57 = sshll.u32 [#allocation8], 4
      %s58 = int_to_ptr.vmem [resolvable:$true] %s57
      %63 = dma.hbm_to_vmem [thread:$0]  %s56, 4096, %s58, [#allocation9], 64, 64, 4
    $region17: #{tpu_custom_call.1} parent=1 // pred_fallthru
      _
    // Predicated region
    $region18: #{tpu_custom_call.1} parent=1 // pred_check
      _
    $region19: #{tpu_custom_call.1} parent=1 // pred_check_branch
      %65 = sbr.rel (0) target = $region21
    $region20: #{tpu_custom_call.1} parent=1 // pred_region
      _
    $region21: #{tpu_custom_call.1} parent=1 // pred_fallthru
      _
    // Predicated region
    $region22: #{tpu_custom_call.1} parent=1 // pred_check
      _
    $region23: #{tpu_custom_call.1} parent=1 // pred_check_branch
      %67 = sbr.rel (0) target = $region25
    $region24: #{tpu_custom_call.1} parent=1 // pred_region
      %69 = dma.done [#allocation3], 256
    $region25: #{tpu_custom_call.1} parent=1 // pred_fallthru
      _
    // Predicated region
    $region26: #{tpu_custom_call.1} parent=1 // pred_check
      _
    $region27: #{tpu_custom_call.1} parent=1 // pred_check_branch
      %71 = sbr.rel (0) target = $region29
    $region28: #{tpu_custom_call.1} parent=1 // pred_region
      %73 = dma.done [#allocation6], 4096
    $region29: #{tpu_custom_call.1} parent=1 // pred_fallthru
      _
    // Predicated region
    $region30: #{tpu_custom_call.1} parent=1 // pred_check
      _
    $region31: #{tpu_custom_call.1} parent=1 // pred_check_branch
      %75 = sbr.rel (0) target = $region33
    $region32: #{tpu_custom_call.1} parent=1 // pred_region
      %77 = dma.done [#allocation6], 64
    $region33: #{tpu_custom_call.1} parent=1 // pred_fallthru
      _
    // Predicated region
    $region34: #{tpu_custom_call.1} parent=1 // pred_check
      _
    $region35: #{tpu_custom_call.1} parent=1 // pred_check_branch
      %79 = sbr.rel (0) target = $region37
    $region36: #{tpu_custom_call.1} parent=1 // pred_region
      %81 = dma.done [#allocation9], 4096
    $region37: #{tpu_custom_call.1} parent=1 // pred_fallthru
      _
    %v82 = vld [vmem:[#allocation2] sm:$0xff]
    %v83 = vld [vmem:[#allocation2 + $0x8] sm:$0xff]
    %v84 = vpack.c.bf16 %v83, %v82
    %v85 = vld [vmem:[#allocation5] sm:$0xff]
    %v86 = vld [vmem:[#allocation5 + $0x8] sm:$0xff]
    %v87 = vld [vmem:[#allocation5 + $0x10] sm:$0xff]
    %v88 = vld [vmem:[#allocation5 + $0x18] sm:$0xff]
    %v89 = vld [vmem:[#allocation5 + $0x20] sm:$0xff]
    %v90 = vld [vmem:[#allocation5 + $0x28] sm:$0xff]
    %v91 = vld [vmem:[#allocation5 + $0x30] sm:$0xff]
    %v92 = vld [vmem:[#allocation5 + $0x38] sm:$0xff]
    %v93 = vld [vmem:[#allocation5 + $0x40] sm:$0xff]
    %v94 = vld [vmem:[#allocation5 + $0x48] sm:$0xff]
    %v95 = vld [vmem:[#allocation5 + $0x50] sm:$0xff]
    %v96 = vld [vmem:[#allocation5 + $0x58] sm:$0xff]
    %v97 = vld [vmem:[#allocation5 + $0x60] sm:$0xff]
    %v98 = vld [vmem:[#allocation5 + $0x68] sm:$0xff]
    %v99 = vld [vmem:[#allocation5 + $0x70] sm:$0xff]
    %v100 = vld [vmem:[#allocation5 + $0x78] sm:$0xff]
    %v101 = vld [vmem:[#allocation5 + $0x80] sm:$0xff]
    %v102 = vld [vmem:[#allocation5 + $0x88] sm:$0xff]
    %v103 = vld [vmem:[#allocation5 + $0x90] sm:$0xff]
    %v104 = vld [vmem:[#allocation5 + $0x98] sm:$0xff]
    %v105 = vld [vmem:[#allocation5 + $0xa0] sm:$0xff]
    %v106 = vld [vmem:[#allocation5 + $0xa8] sm:$0xff]
    %v107 = vld [vmem:[#allocation5 + $0xb0] sm:$0xff]
    %v108 = vld [vmem:[#allocation5 + $0xb8] sm:$0xff]
    %v109 = vld [vmem:[#allocation5 + $0xc0] sm:$0xff]
    %v110 = vld [vmem:[#allocation5 + $0xc8] sm:$0xff]
    %v111 = vld [vmem:[#allocation5 + $0xd0] sm:$0xff]
    %v112 = vld [vmem:[#allocation5 + $0xd8] sm:$0xff]
    %v113 = vld [vmem:[#allocation5 + $0xe0] sm:$0xff]
    %v114 = vld [vmem:[#allocation5 + $0xe8] sm:$0xff]
    %v115 = vld [vmem:[#allocation5 + $0xf0] sm:$0xff]
    %v116 = vld [vmem:[#allocation5 + $0xf8] sm:$0xff]
    %v117 = vld [vmem:[#allocation7] sm:$0xf]
    %v119 = vperm.slane %v117, 0
    %v120 = vperm.slane %v117, 1
    %v121 = vperm.slane %v117, 2
    %v122 = vperm.slane %v117, 3
    %v159 = vunpack.c.l.b16 %v85
    %v160 = vunpack.c.h.b16 %v85
    %v161 = vunpack.c.l.b16 %v86
    %v162 = vunpack.c.h.b16 %v86
    %v163 = vunpack.c.l.b16 %v87
    %v164 = vunpack.c.h.b16 %v87
    %v165 = vunpack.c.l.b16 %v88
    %v166 = vunpack.c.h.b16 %v88
    %v167 = vunpack.c.l.b16 %v89
    %v168 = vunpack.c.h.b16 %v89
    %v169 = vunpack.c.l.b16 %v90
    %v170 = vunpack.c.h.b16 %v90
    %v171 = vunpack.c.l.b16 %v91
    %v172 = vunpack.c.h.b16 %v91
    %v173 = vunpack.c.l.b16 %v92
    %v174 = vunpack.c.h.b16 %v92
    %v175 = vunpack.c.l.b16 %v93
    %v176 = vunpack.c.h.b16 %v93
    %v177 = vunpack.c.l.b16 %v94
    %v178 = vunpack.c.h.b16 %v94
    %v179 = vunpack.c.l.b16 %v95
    %v180 = vunpack.c.h.b16 %v95
    %v181 = vunpack.c.l.b16 %v96
    %v182 = vunpack.c.h.b16 %v96
    %v183 = vunpack.c.l.b16 %v97
    %v184 = vunpack.c.h.b16 %v97
    %v185 = vunpack.c.l.b16 %v98
    %v186 = vunpack.c.h.b16 %v98
    %v187 = vunpack.c.l.b16 %v99
    %v188 = vunpack.c.h.b16 %v99
    %v189 = vunpack.c.l.b16 %v100
    %v190 = vunpack.c.h.b16 %v100
    %v191 = vunpack.c.l.b16 %v101
    %v192 = vunpack.c.h.b16 %v101
    %v193 = vunpack.c.l.b16 %v102
    %v194 = vunpack.c.h.b16 %v102
    %v195 = vunpack.c.l.b16 %v103
    %v196 = vunpack.c.h.b16 %v103
    %v197 = vunpack.c.l.b16 %v104
    %v198 = vunpack.c.h.b16 %v104
    %v199 = vunpack.c.l.b16 %v105
    %v200 = vunpack.c.h.b16 %v105
    %v201 = vunpack.c.l.b16 %v106
    %v202 = vunpack.c.h.b16 %v106
    %v203 = vunpack.c.l.b16 %v107
    %v204 = vunpack.c.h.b16 %v107
    %v205 = vunpack.c.l.b16 %v108
    %v206 = vunpack.c.h.b16 %v108
    %v207 = vunpack.c.l.b16 %v109
    %v208 = vunpack.c.h.b16 %v109
    %v209 = vunpack.c.l.b16 %v110
    %v210 = vunpack.c.h.b16 %v110
    %v211 = vunpack.c.l.b16 %v111
    %v212 = vunpack.c.h.b16 %v111
    %v213 = vunpack.c.l.b16 %v112
    %v214 = vunpack.c.h.b16 %v112
    %v215 = vunpack.c.l.b16 %v113
    %v216 = vunpack.c.h.b16 %v113
    %v217 = vunpack.c.l.b16 %v114
    %v218 = vunpack.c.h.b16 %v114
    %v219 = vunpack.c.l.b16 %v115
    %v220 = vunpack.c.h.b16 %v115
    %v221 = vunpack.c.l.b16 %v116
    %v222 = vunpack.c.h.b16 %v116
    %v223 = vpack.c.b16 %v163, %v159
    %v224 = vpack.c.b16 %v164, %v160
    %v225 = vpack.c.b16 %v165, %v161
    %v226 = vpack.c.b16 %v166, %v162
    %v227 = vpack.c.b16 %v171, %v167
    %v228 = vpack.c.b16 %v172, %v168
    %v229 = vpack.c.b16 %v173, %v169
    %v230 = vpack.c.b16 %v174, %v170
    %v231 = vpack.c.b16 %v179, %v175
    %v232 = vpack.c.b16 %v180, %v176
    %v233 = vpack.c.b16 %v181, %v177
    %v234 = vpack.c.b16 %v182, %v178
    %v235 = vpack.c.b16 %v187, %v183
    %v236 = vpack.c.b16 %v188, %v184
    %v237 = vpack.c.b16 %v189, %v185
    %v238 = vpack.c.b16 %v190, %v186
    %v239 = vpack.c.b16 %v195, %v191
    %v240 = vpack.c.b16 %v196, %v192
    %v241 = vpack.c.b16 %v197, %v193
    %v242 = vpack.c.b16 %v198, %v194
    %v243 = vpack.c.b16 %v203, %v199
    %v244 = vpack.c.b16 %v204, %v200
    %v245 = vpack.c.b16 %v205, %v201
    %v246 = vpack.c.b16 %v206, %v202
    %v247 = vpack.c.b16 %v211, %v207
    %v248 = vpack.c.b16 %v212, %v208
    %v249 = vpack.c.b16 %v213, %v209
    %v250 = vpack.c.b16 %v214, %v210
    %v251 = vpack.c.b16 %v219, %v215
    %v252 = vpack.c.b16 %v220, %v216
    %v253 = vpack.c.b16 %v221, %v217
    %v254 = vpack.c.b16 %v222, %v218
    %287 = vmatpush.bf16.msra.mxu0 %v251
    %288 = vmatpush.bf16.msra.mxu0 %v247
    %289 = vmatpush.bf16.msra.mxu0 %v243
    %290 = vmatpush.bf16.msra.mxu0 %v239
    %291 = vmatpush.bf16.msra.mxu0 %v235
    %292 = vmatpush.bf16.msra.mxu0 %v231
    %293 = vmatpush.bf16.msra.mxu0 %v227
    %294 = vmatpush.bf16.msra.mxu0 %v223
    %295 = vmatmul.bf16.gmra.mxu0 %v84
    %v296 = vpop.f32.mrf.mxu0
    %v297 = vadd.f32 %v119, %v296
    %v298 = vpop.f32.mrf.mxu0
    %v299 = vadd.f32 %v119, %v298
    %300 = vdwg.mxu0
    %301 = vmatpush.bf16.msra.mxu0 %v252
    %302 = vmatpush.bf16.msra.mxu0 %v248
    %303 = vmatpush.bf16.msra.mxu0 %v244
    %304 = vmatpush.bf16.msra.mxu0 %v240
    %305 = vmatpush.bf16.msra.mxu0 %v236
    %306 = vmatpush.bf16.msra.mxu0 %v232
    %307 = vmatpush.bf16.msra.mxu0 %v228
    %308 = vmatpush.bf16.msra.mxu0 %v224
    %309 = vmatmul.bf16.gmra.mxu0 %v84
    %v310 = vpop.f32.mrf.mxu0
    %v311 = vadd.f32 %v120, %v310
    %v312 = vpop.f32.mrf.mxu0
    %v313 = vadd.f32 %v120, %v312
    %314 = vdwg.mxu0
    %315 = vmatpush.bf16.msra.mxu0 %v253
    %316 = vmatpush.bf16.msra.mxu0 %v249
    %317 = vmatpush.bf16.msra.mxu0 %v245
    %318 = vmatpush.bf16.msra.mxu0 %v241
    %319 = vmatpush.bf16.msra.mxu0 %v237
    %320 = vmatpush.bf16.msra.mxu0 %v233
    %321 = vmatpush.bf16.msra.mxu0 %v229
    %322 = vmatpush.bf16.msra.mxu0 %v225
    %323 = vmatmul.bf16.gmra.mxu0 %v84
    %v324 = vpop.f32.mrf.mxu0
    %v325 = vadd.f32 %v121, %v324
    %v326 = vpop.f32.mrf.mxu0
    %v327 = vadd.f32 %v121, %v326
    %328 = vdwg.mxu0
    %329 = vmatpush.bf16.msra.mxu0 %v254
    %330 = vmatpush.bf16.msra.mxu0 %v250
    %331 = vmatpush.bf16.msra.mxu0 %v246
    %332 = vmatpush.bf16.msra.mxu0 %v242
    %333 = vmatpush.bf16.msra.mxu0 %v238
    %334 = vmatpush.bf16.msra.mxu0 %v234
    %335 = vmatpush.bf16.msra.mxu0 %v230
    %336 = vmatpush.bf16.msra.mxu0 %v226
    %337 = vmatmul.bf16.gmra.mxu0 %v84
    %v338 = vpop.f32.mrf.mxu0
    %v339 = vadd.f32 %v122, %v338
    %v340 = vpop.f32.mrf.mxu0
    %v341 = vadd.f32 %v122, %v340
    %342 = vdwg.mxu0
    %v343 = vmax.f32 %v297, 0.0
    %v344 = vmax.f32 %v311, 0.0
    %v345 = vmax.f32 %v325, 0.0
    %v346 = vmax.f32 %v339, 0.0
    %v347 = vmax.f32 %v299, 0.0
    %v348 = vmax.f32 %v313, 0.0
    %v349 = vmax.f32 %v327, 0.0
    %v350 = vmax.f32 %v341, 0.0
    %v351 = vpack.c.bf16 %v347, %v343
    %v352 = vpack.c.bf16 %v348, %v344
    %v353 = vpack.c.bf16 %v349, %v345
    %v354 = vpack.c.bf16 %v350, %v346
    %v355 = vld [vmem:[#allocation8] sm:$0xf]
    %v356 = vld [vmem:[#allocation8 + $0x4] sm:$0xf]
    %v357 = vld [vmem:[#allocation8 + $0x8] sm:$0xf]
    %v358 = vld [vmem:[#allocation8 + $0xc] sm:$0xf]
    %v359 = vld [vmem:[#allocation8 + $0x10] sm:$0xf]
    %v360 = vld [vmem:[#allocation8 + $0x14] sm:$0xf]
    %v361 = vld [vmem:[#allocation8 + $0x18] sm:$0xf]
    %v362 = vld [vmem:[#allocation8 + $0x1c] sm:$0xf]
    %v363 = vld [vmem:[#allocation8 + $0x20] sm:$0xf]
    %v364 = vld [vmem:[#allocation8 + $0x24] sm:$0xf]
    %v365 = vld [vmem:[#allocation8 + $0x28] sm:$0xf]
    %v366 = vld [vmem:[#allocation8 + $0x2c] sm:$0xf]
    %v367 = vld [vmem:[#allocation8 + $0x30] sm:$0xf]
    %v368 = vld [vmem:[#allocation8 + $0x34] sm:$0xf]
    %v369 = vld [vmem:[#allocation8 + $0x38] sm:$0xf]
    %v370 = vld [vmem:[#allocation8 + $0x3c] sm:$0xf]
    %v371 = vld [vmem:[#allocation8 + $0x40] sm:$0xf]
    %v372 = vld [vmem:[#allocation8 + $0x44] sm:$0xf]
    %v373 = vld [vmem:[#allocation8 + $0x48] sm:$0xf]
    %v374 = vld [vmem:[#allocation8 + $0x4c] sm:$0xf]
    %v375 = vld [vmem:[#allocation8 + $0x50] sm:$0xf]
    %v376 = vld [vmem:[#allocation8 + $0x54] sm:$0xf]
    %v377 = vld [vmem:[#allocation8 + $0x58] sm:$0xf]
    %v378 = vld [vmem:[#allocation8 + $0x5c] sm:$0xf]
    %v379 = vld [vmem:[#allocation8 + $0x60] sm:$0xf]
    %v380 = vld [vmem:[#allocation8 + $0x64] sm:$0xf]
    %v381 = vld [vmem:[#allocation8 + $0x68] sm:$0xf]
    %v382 = vld [vmem:[#allocation8 + $0x6c] sm:$0xf]
    %v383 = vld [vmem:[#allocation8 + $0x70] sm:$0xf]
    %v384 = vld [vmem:[#allocation8 + $0x74] sm:$0xf]
    %v385 = vld [vmem:[#allocation8 + $0x78] sm:$0xf]
    %v386 = vld [vmem:[#allocation8 + $0x7c] sm:$0xf]
    %v387 = vld [vmem:[#allocation8 + $0x80] sm:$0xf]
    %v388 = vld [vmem:[#allocation8 + $0x84] sm:$0xf]
    %v389 = vld [vmem:[#allocation8 + $0x88] sm:$0xf]
    %v390 = vld [vmem:[#allocation8 + $0x8c] sm:$0xf]
    %v391 = vld [vmem:[#allocation8 + $0x90] sm:$0xf]
    %v392 = vld [vmem:[#allocation8 + $0x94] sm:$0xf]
    %v393 = vld [vmem:[#allocation8 + $0x98] sm:$0xf]
    %v394 = vld [vmem:[#allocation8 + $0x9c] sm:$0xf]
    %v395 = vld [vmem:[#allocation8 + $0xa0] sm:$0xf]
    %v396 = vld [vmem:[#allocation8 + $0xa4] sm:$0xf]
    %v397 = vld [vmem:[#allocation8 + $0xa8] sm:$0xf]
    %v398 = vld [vmem:[#allocation8 + $0xac] sm:$0xf]
    %v399 = vld [vmem:[#allocation8 + $0xb0] sm:$0xf]
    %v400 = vld [vmem:[#allocation8 + $0xb4] sm:$0xf]
    %v401 = vld [vmem:[#allocation8 + $0xb8] sm:$0xf]
    %v402 = vld [vmem:[#allocation8 + $0xbc] sm:$0xf]
    %v403 = vld [vmem:[#allocation8 + $0xc0] sm:$0xf]
    %v404 = vld [vmem:[#allocation8 + $0xc4] sm:$0xf]
    %v405 = vld [vmem:[#allocation8 + $0xc8] sm:$0xf]
    %v406 = vld [vmem:[#allocation8 + $0xcc] sm:$0xf]
    %v407 = vld [vmem:[#allocation8 + $0xd0] sm:$0xf]
    %v408 = vld [vmem:[#allocation8 + $0xd4] sm:$0xf]
    %v409 = vld [vmem:[#allocation8 + $0xd8] sm:$0xf]
    %v410 = vld [vmem:[#allocation8 + $0xdc] sm:$0xf]
    %v411 = vld [vmem:[#allocation8 + $0xe0] sm:$0xf]
    %v412 = vld [vmem:[#allocation8 + $0xe4] sm:$0xf]
    %v413 = vld [vmem:[#allocation8 + $0xe8] sm:$0xf]
    %v414 = vld [vmem:[#allocation8 + $0xec] sm:$0xf]
    %v415 = vld [vmem:[#allocation8 + $0xf0] sm:$0xf]
    %v416 = vld [vmem:[#allocation8 + $0xf4] sm:$0xf]
    %v417 = vld [vmem:[#allocation8 + $0xf8] sm:$0xf]
    %v418 = vld [vmem:[#allocation8 + $0xfc] sm:$0xf]
    %v419 = vld [vmem:[%s4] sm:$0x1]
    %v421 = vperm.slane %v419, 0
    %v487 = vunpack.c.l.b16 %v355
    %v488 = vunpack.c.l.b16 %v356
    %v489 = vunpack.c.l.b16 %v357
    %v490 = vunpack.c.l.b16 %v358
    %v491 = vunpack.c.l.b16 %v359
    %v492 = vunpack.c.l.b16 %v360
    %v493 = vunpack.c.l.b16 %v361
    %v494 = vunpack.c.l.b16 %v362
    %v495 = vunpack.c.l.b16 %v363
    %v496 = vunpack.c.l.b16 %v364
    %v497 = vunpack.c.l.b16 %v365
    %v498 = vunpack.c.l.b16 %v366
    %v499 = vunpack.c.l.b16 %v367
    %v500 = vunpack.c.l.b16 %v368
    %v501 = vunpack.c.l.b16 %v369
    %v502 = vunpack.c.l.b16 %v370
    %v503 = vunpack.c.l.b16 %v371
    %v504 = vunpack.c.l.b16 %v372
    %v505 = vunpack.c.l.b16 %v373
    %v506 = vunpack.c.l.b16 %v374
    %v507 = vunpack.c.l.b16 %v375
    %v508 = vunpack.c.l.b16 %v376
    %v509 = vunpack.c.l.b16 %v377
    %v510 = vunpack.c.l.b16 %v378
    %v511 = vunpack.c.l.b16 %v379
    %v512 = vunpack.c.l.b16 %v380
    %v513 = vunpack.c.l.b16 %v381
    %v514 = vunpack.c.l.b16 %v382
    %v515 = vunpack.c.l.b16 %v383
    %v516 = vunpack.c.l.b16 %v384
    %v517 = vunpack.c.l.b16 %v385
    %v518 = vunpack.c.l.b16 %v386
    %v519 = vunpack.c.l.b16 %v387
    %v520 = vunpack.c.l.b16 %v388
    %v521 = vunpack.c.l.b16 %v389
    %v522 = vunpack.c.l.b16 %v390
    %v523 = vunpack.c.l.b16 %v391
    %v524 = vunpack.c.l.b16 %v392
    %v525 = vunpack.c.l.b16 %v393
    %v526 = vunpack.c.l.b16 %v394
    %v527 = vunpack.c.l.b16 %v395
    %v528 = vunpack.c.l.b16 %v396
    %v529 = vunpack.c.l.b16 %v397
    %v530 = vunpack.c.l.b16 %v398
    %v531 = vunpack.c.l.b16 %v399
    %v532 = vunpack.c.l.b16 %v400
    %v533 = vunpack.c.l.b16 %v401
    %v534 = vunpack.c.l.b16 %v402
    %v535 = vunpack.c.l.b16 %v403
    %v536 = vunpack.c.l.b16 %v404
    %v537 = vunpack.c.l.b16 %v405
    %v538 = vunpack.c.l.b16 %v406
    %v539 = vunpack.c.l.b16 %v407
    %v540 = vunpack.c.l.b16 %v408
    %v541 = vunpack.c.l.b16 %v409
    %v542 = vunpack.c.l.b16 %v410
    %v543 = vunpack.c.l.b16 %v411
    %v544 = vunpack.c.l.b16 %v412
    %v545 = vunpack.c.l.b16 %v413
    %v546 = vunpack.c.l.b16 %v414
    %v547 = vunpack.c.l.b16 %v415
    %v548 = vunpack.c.l.b16 %v416
    %v549 = vunpack.c.l.b16 %v417
    %v550 = vunpack.c.l.b16 %v418
    %v551 = vpack.c.b16 %v488, %v487
    %v552 = vpack.c.b16 %v490, %v489
    %v553 = vpack.c.b16 %v492, %v491
    %v554 = vpack.c.b16 %v494, %v493
    %v555 = vpack.c.b16 %v496, %v495
    %v556 = vpack.c.b16 %v498, %v497
    %v557 = vpack.c.b16 %v500, %v499
    %v558 = vpack.c.b16 %v502, %v501
    %v559 = vpack.c.b16 %v504, %v503
    %v560 = vpack.c.b16 %v506, %v505
    %v561 = vpack.c.b16 %v508, %v507
    %v562 = vpack.c.b16 %v510, %v509
    %v563 = vpack.c.b16 %v512, %v511
    %v564 = vpack.c.b16 %v514, %v513
    %v565 = vpack.c.b16 %v516, %v515
    %v566 = vpack.c.b16 %v518, %v517
    %v567 = vpack.c.b16 %v520, %v519
    %v568 = vpack.c.b16 %v522, %v521
    %v569 = vpack.c.b16 %v524, %v523
    %v570 = vpack.c.b16 %v526, %v525
    %v571 = vpack.c.b16 %v528, %v527
    %v572 = vpack.c.b16 %v530, %v529
    %v573 = vpack.c.b16 %v532, %v531
    %v574 = vpack.c.b16 %v534, %v533
    %v575 = vpack.c.b16 %v536, %v535
    %v576 = vpack.c.b16 %v538, %v537
    %v577 = vpack.c.b16 %v540, %v539
    %v578 = vpack.c.b16 %v542, %v541
    %v579 = vpack.c.b16 %v544, %v543
    %v580 = vpack.c.b16 %v546, %v545
    %v581 = vpack.c.b16 %v548, %v547
    %v582 = vpack.c.b16 %v550, %v549
    %615 = vmatpush.bf16.msra.mxu0 %v558
    %616 = vmatpush.bf16.msra.mxu0 %v557
    %617 = vmatpush.bf16.msra.mxu0 %v556
    %618 = vmatpush.bf16.msra.mxu0 %v555
    %619 = vmatpush.bf16.msra.mxu0 %v554
    %620 = vmatpush.bf16.msra.mxu0 %v553
    %621 = vmatpush.bf16.msra.mxu0 %v552
    %622 = vmatpush.bf16.msra.mxu0 %v551
    %623 = vmatmul.bf16.gmra.mxu0 %v351
    %v624 = vpop.f32.mrf.mxu0
    %v625 = vadd.f32 %v421, %v624
    %v626 = vpop.f32.mrf.mxu0
    %v627 = vadd.f32 %v421, %v626
    %628 = vdwg.mxu0
    %629 = vmatpush.bf16.msra.mxu0 %v566
    %630 = vmatpush.bf16.msra.mxu0 %v565
    %631 = vmatpush.bf16.msra.mxu0 %v564
    %632 = vmatpush.bf16.msra.mxu0 %v563
    %633 = vmatpush.bf16.msra.mxu0 %v562
    %634 = vmatpush.bf16.msra.mxu0 %v561
    %635 = vmatpush.bf16.msra.mxu0 %v560
    %636 = vmatpush.bf16.msra.mxu0 %v559
    %637 = vmatmul.bf16.gmra.mxu0 %v352
    %v638 = vpop.f32.mrf.mxu0
    %v639 = vadd.f32 %v625, %v638
    %v640 = vpop.f32.mrf.mxu0
    %v641 = vadd.f32 %v627, %v640
    %642 = vdwg.mxu0
    %643 = vmatpush.bf16.msra.mxu0 %v574
    %644 = vmatpush.bf16.msra.mxu0 %v573
    %645 = vmatpush.bf16.msra.mxu0 %v572
    %646 = vmatpush.bf16.msra.mxu0 %v571
    %647 = vmatpush.bf16.msra.mxu0 %v570
    %648 = vmatpush.bf16.msra.mxu0 %v569
    %649 = vmatpush.bf16.msra.mxu0 %v568
    %650 = vmatpush.bf16.msra.mxu0 %v567
    %651 = vmatmul.bf16.gmra.mxu0 %v353
    %v652 = vpop.f32.mrf.mxu0
    %v653 = vadd.f32 %v639, %v652
    %v654 = vpop.f32.mrf.mxu0
    %v655 = vadd.f32 %v641, %v654
    %656 = vdwg.mxu0
    %657 = vmatpush.bf16.msra.mxu0 %v582
    %658 = vmatpush.bf16.msra.mxu0 %v581
    %659 = vmatpush.bf16.msra.mxu0 %v580
    %660 = vmatpush.bf16.msra.mxu0 %v579
    %661 = vmatpush.bf16.msra.mxu0 %v578
    %662 = vmatpush.bf16.msra.mxu0 %v577
    %663 = vmatpush.bf16.msra.mxu0 %v576
    %664 = vmatpush.bf16.msra.mxu0 %v575
    %665 = vmatmul.bf16.gmra.mxu0 %v354
    %v666 = vpop.f32.mrf.mxu0
    %v667 = vadd.f32 %v653, %v666
    %v668 = vpop.f32.mrf.mxu0
    %v669 = vadd.f32 %v655, %v668
    %670 = vdwg.mxu0
    %671 = vst [vmem:[#allocation10] sm:$0xff] %v667
    %672 = vst [vmem:[#allocation10 + $0x8] sm:$0xff] %v669
    // Predicated region
    $region38: #{tpu_custom_call.1} parent=1 // pred_check
      _
    $region39: #{tpu_custom_call.1} parent=1 // pred_check_branch
      %674 = sbr.rel (0) target = $region41
    $region40: #{tpu_custom_call.1} parent=1 // pred_region
      %676 = vsyncadd [#allocation4], 0
      %s677 = sshll.u32 [#allocation10], 4
      %s678 = int_to_ptr.vmem [resolvable:$true] %s677
      %s679 = sshll.u32 %s5, 4
      %s680 = int_to_ptr.hbm [resolvable:$true] %s679
      %685 = dma.vmem_to_hbm [thread:$0]  %s678, 256, %s680, [#allocation4], 128, 128, 8
    $region41: #{tpu_custom_call.1} parent=1 // pred_fallthru
      _
    // Predicated region
    $region42: #{tpu_custom_call.1} parent=1 // pred_check
      _
    $region43: #{tpu_custom_call.1} parent=1 // pred_check_branch
      %687 = sbr.rel (0) target = $region45
    $region44: #{tpu_custom_call.1} parent=1 // pred_region
      %689 = dma.done [#allocation4], 256
    $region45: #{tpu_custom_call.1} parent=1 // pred_fallthru
      _
    %690 = vsyncpa [#allocation3], 1
    %691 = vsyncpa [#allocation6], 1
    %692 = vsyncpa [#allocation9], 1
    %693 = vsyncpa [#allocation4], 1

</llo_original>
